<compile_context>
chip_gen: v6e
topology: v6e:2x2x1
jax: 0.10.0
libtpu: 0.0.40
codegen_flags: <defaults>
</compile_context>

<pallas_src>
import functools
import math

import jax
import jax.numpy as jnp
from jax import lax
from jax.experimental import pallas as pl
from jax.experimental.pallas import tpu as pltpu


def make_pe_table(max_len: int, d_model: int, dtype=jnp.float32) -> jnp.ndarray:
    """Builds the (max_len, d_model) sinusoidal positional-encoding buffer."""
    position = jnp.arange(max_len, dtype=jnp.float32)[:, None]            # (L, 1)
    div_term = jnp.exp(
        jnp.arange(0, d_model, 2, dtype=jnp.float32) * (-math.log(10000.0) / d_model)
    )                                                                      # (D/2,)
    pe = jnp.zeros((max_len, d_model), dtype=jnp.float32)
    pe = pe.at[:, 0::2].set(jnp.sin(position * div_term))
    pe = pe.at[:, 1::2].set(jnp.cos(position * div_term))
    return pe.astype(dtype)


def _i32(c: int):
    """Python (possibly >2^31) constant -> two's-complement int32 scalar."""
    c &= 0xFFFFFFFF
    if c >= (1 << 31):
        c -= 1 << 32
    return jnp.int32(c)


def _pe_dropout_kernel(x_ref, pe_ref, o_ref, *, p, train, seed, tile_rows, ncols):
    # Elementwise add; pe may be bf16 -> upcast in-register.
    y = x_ref[...].astype(jnp.float32) + pe_ref[...].astype(jnp.float32)

    if train and p > 0.0:
        if p >= 1.0:
            y = jnp.zeros_like(y)
        else:
            shape = y.shape
            # Global row-major flat index of each element (tiling-invariant).
            row0 = pl.program_id(0) * tile_rows
            rows = lax.broadcasted_iota(jnp.int32, shape, 0) + row0
            cols = lax.broadcasted_iota(jnp.int32, shape, 1)
            flat = rows * ncols + cols
            # murmur3-style fmix32 counter hash (int32 with masked logical
            # shifts -> bit-identical to the uint32 version, lowers everywhere).
            h = flat ^ _i32(seed)
            h = h * _i32(0x9E3779B1) + _i32(0x7F4A7C15)
            h = h ^ ((h >> 16) & 0xFFFF)
            h = h * _i32(0x85EBCA6B)
            h = h ^ ((h >> 13) & 0x7FFFF)
            h = h * _i32(0xC2B2AE35)
            h = h ^ ((h >> 16) & 0xFFFF)
            r24 = (h >> 8) & 0xFFFFFF                    # uniform in [0, 2^24)
            thr = int(round(p * (1 << 24)))              # keep prob = 1 - p
            keep = r24 >= thr
            y = jnp.where(keep, y * jnp.float32(1.0 / (1.0 - p)), jnp.zeros_like(y))

    o_ref[...] = y.astype(o_ref.dtype)


def _choose_row_tile(rows: int, max_tile: int = 1024) -> int:
    """Largest tile <= max_tile that divides rows and is a multiple of 8;
    else a single full-height block (block == full array dims is legal)."""
    if rows <= max_tile:
        return rows
    for t in (1024, 512, 256, 128, 64, 32, 16, 8):
        if rows % t == 0:
            return t
    return rows


def positional_encoding(x, pe, *, seed=0, p=0.1, train=True):
    """x: (S, D). pe: (max_len, D) (any float dtype). Returns dropout(x + pe[:S])."""
    S, D = x.shape
    assert pe.shape[0] >= S and pe.shape[1] == D
    pe_s = pe[:S, :]

    # Lane-dense reshape: row-major (S, D) -> (S*D/128, 128) when possible.
    total = S * D
    if total % 128 == 0:
        R, C = total // 128, 128
        x2 = x.reshape(R, C)
        pe2 = pe_s.reshape(R, C)
    else:
        R, C = S, D
        x2, pe2 = x, pe_s

    TR = _choose_row_tile(R)
    grid = (pl.cdiv(R, TR),)   # TR divides R by construction

    kernel = functools.partial(
        _pe_dropout_kernel,
        p=float(p), train=bool(train), seed=int(seed) & 0xFFFFFFFF,
        tile_rows=TR, ncols=C,
    )

    out2 = pl.pallas_call(
        kernel,
        out_shape=jax.ShapeDtypeStruct((R, C), x.dtype),
        grid=grid,
        in_specs=[
            pl.BlockSpec((TR, C), lambda i: (i, 0)),   # x tile
            pl.BlockSpec((TR, C), lambda i: (i, 0)),   # pe tile
        ],
        out_specs=pl.BlockSpec((TR, C), lambda i: (i, 0)),
        compiler_params=pltpu.CompilerParams(
            dimension_semantics=("parallel",),         # lets v7x use both TCs
            vmem_limit_bytes=32 * 1024 * 1024,         # safe on v5e/v6e/v7x
        ),
    )(x2, pe2)

    return out2.reshape(S, D)


if __name__ == "__main__":
    d_model = 32
    seq_len = 8
    max_len = 5000
    p_drop = 0.1

    key = jax.random.PRNGKey(0)
    x = jax.random.normal(key, (seq_len, d_model), dtype=jnp.float32)

    # PE buffer stored in bf16 (halves its HBM read traffic).
    pe = make_pe_table(max_len, d_model, dtype=jnp.bfloat16)

    # Reference: kernel upcasts the bf16 table to f32 before the add.
    ref = x + pe[:seq_len, :].astype(jnp.float32)

    # Eval-mode path (dropout = identity): exact match vs reference.
    y_eval = jax.block_until_ready(
        positional_encoding(x, pe, seed=0, p=p_drop, train=False))
    assert y_eval.shape == (seq_len, d_model)
    assert jnp.allclose(y_eval, ref, atol=1e-6), "eval-mode mismatch vs reference"

    # Train-mode path (module default: dropout active).
    y_train = jax.block_until_ready(
        positional_encoding(x, pe, seed=0, p=p_drop, train=True))
    assert y_train.shape == (seq_len, d_model)
    scaled = ref / (1.0 - p_drop)
    ok = jnp.logical_or(jnp.isclose(y_train, scaled, rtol=1e-5, atol=1e-5),
                        y_train == 0.0)
    assert bool(jnp.all(ok)), "train-mode dropout values inconsistent"
    frac_kept = float(jnp.mean((y_train != 0.0).astype(jnp.float32)))
    assert 0.6 < frac_kept <= 1.0, f"dropout keep fraction implausible: {frac_kept}"

    print("KERNEL_OK")
</pallas_src>

<mosaic_0001>
module attributes {stable_mosaic.version = 11 : i64} {
  func.func @_pe_dropout_kernel(%arg0: i32, %arg1: memref<2x128xf32, #tpu.memory_space<vmem>>, %arg2: memref<2x128xbf16, #tpu.memory_space<vmem>>, %arg3: memref<2x128xf32, #tpu.memory_space<vmem>>) attributes {dimension_semantics = [#tpu.dimension_semantics<parallel>], iteration_bounds = array<i64: 1>, scalar_prefetch = 0 : i64, scratch_operands = 0 : i64, tpu.core_type = #tpu.core_type<tc>, window_params = [{transform_indices = @transform_0, window_bounds = array<i64: 2, 128>}, {transform_indices = @transform_1, window_bounds = array<i64: 2, 128>}, {transform_indices = @transform_2, window_bounds = array<i64: 2, 128>}]} {
    %c0 = arith.constant 0 : index
    %c0_0 = arith.constant 0 : index
    %0 = vector.load %arg1[%c0, %c0_0] : memref<2x128xf32, #tpu.memory_space<vmem>>, vector<2x128xf32>
    %c0_1 = arith.constant 0 : index
    %c0_2 = arith.constant 0 : index
    %1 = vector.load %arg2[%c0_1, %c0_2] : memref<2x128xbf16, #tpu.memory_space<vmem>>, vector<2x128xbf16>
    %2 = arith.extf %1 : vector<2x128xbf16> to vector<2x128xf32>
    %3 = arith.addf %0, %2 : vector<2x128xf32>
    %c0_3 = arith.constant 0 : index
    %c0_4 = arith.constant 0 : index
    %4 = vector.load %arg3[%c0_3, %c0_4] : memref<2x128xf32, #tpu.memory_space<vmem>>, vector<2x128xf32>
    tpu.vector_store %arg3[%c0_3, %c0_4], %3 {strides = array<i32>} : memref<2x128xf32, #tpu.memory_space<vmem>>, vector<2x128xf32>,
    return
  }
  func.func @transform_0(%arg0: i32) -> (i32, i32) {
    %c0_i32 = arith.constant 0 : i32
    %c0_i32_0 = arith.constant 0 : i32
    return %arg0, %c0_i32 : i32, i32
  }
  func.func @transform_1(%arg0: i32) -> (i32, i32) {
    %c0_i32 = arith.constant 0 : i32
    %c0_i32_0 = arith.constant 0 : i32
    return %arg0, %c0_i32 : i32, i32
  }
  func.func @transform_2(%arg0: i32) -> (i32, i32) {
    %c0_i32 = arith.constant 0 : i32
    %c0_i32_0 = arith.constant 0 : i32
    return %arg0, %c0_i32 : i32, i32
  }
}

</mosaic_0001>

<llo_original>
// kernel: tpu_custom_call.1
$region0: #{tpu_custom_call.1}
  #allocation0 [shape = 'u32[]', space=smem, size = 0x4, offset = 0x4, fixed_abs, tag = 'smem constant byte address 0x4 - core index']
  #allocation1 [shape = 'u32[144,128]{1,0:T(1,128)}', space=vmem, size = 0x12000, scoped, tag = 'internal scratch']
  %s0 = inlined_call_operand.hbm [shape: f32[2,128], index: 0, kind: input, shape index: {}]
  %s1 = inlined_call_operand.vmem [shape: bf16[2,128], index: 1, kind: input, shape index: {}]
  %s2 = inlined_call_operand.hbm [shape: f32[2,128], index: 2, kind: output, shape index: {}]
  %s3 = sld [smem:[#allocation0]]
  $region22: #{tpu_custom_call.1} parent=0
    _
  %s5 = ssub.s32 1, %s3
  %s6 = scalar_select 0, %s5, %s3
  $region1: #{tpu_custom_call.1} parent=0
    #allocation2 [shape = 'u8[1024]{0}', space=vmem, size = 0x400, scoped, tag = 'input window, operand 0, single buffered']
    #allocation3 [shape = 's32[1]{0}', space=sflag, size = 0x4, scoped, tag = 'scoped memory for tpu_custom_call.1']
    #allocation4 [shape = 's32[1]{0}', space=sflag, size = 0x4, scoped, tag = 'scoped memory for tpu_custom_call.1']
    #allocation5 [shape = 'u8[1024]{0}', space=vmem, size = 0x400, scoped, tag = 'output window, operand 0, single buffered']
    %7 = vsyncpa [#allocation3], 0
    %8 = vsyncpa [#allocation4], 0
    // Predicated region
    $region2: #{tpu_custom_call.1} parent=1 // pred_check
      _
    $region3: #{tpu_custom_call.1} parent=1 // pred_check_branch
      %10 = sbr.rel (0) target = $region5
    $region4: #{tpu_custom_call.1} parent=1 // pred_region
      %s12 = ssub.s32 32, 32
      %13 = vsyncadd [#allocation3], %s12
      %s15 = sshll.u32 [#allocation2], 4
      %s16 = int_to_ptr.vmem [resolvable:$true] %s15
      %18 = dma.hbm_to_vmem [thread:$0]  %s0, 32, %s16, [#allocation3]
    $region5: #{tpu_custom_call.1} parent=1 // pred_fallthru
      _
    // Predicated region
    $region6: #{tpu_custom_call.1} parent=1 // pred_check
      _
    $region7: #{tpu_custom_call.1} parent=1 // pred_check_branch
      %20 = sbr.rel (0) target = $region9
    $region8: #{tpu_custom_call.1} parent=1 // pred_region
      _
    $region9: #{tpu_custom_call.1} parent=1 // pred_fallthru
      _
    // Predicated region
    $region10: #{tpu_custom_call.1} parent=1 // pred_check
      _
    $region11: #{tpu_custom_call.1} parent=1 // pred_check_branch
      %22 = sbr.rel (0) target = $region13
    $region12: #{tpu_custom_call.1} parent=1 // pred_region
      %23 = dma.done [#allocation3], 32
    $region13: #{tpu_custom_call.1} parent=1 // pred_fallthru
      _
    %v24 = vld [vmem:[#allocation2] sm:$0x3]
    %v25 = vld [vmem:[%s1] sm:$0x1]
    %v26 = vunpack.c.l.bf16 %v25
    %v27 = vadd.f32 %v24, %v26
    %28 = vst [vmem:[#allocation5] sm:$0x3] %v27
    // Predicated region
    $region14: #{tpu_custom_call.1} parent=1 // pred_check
      _
    $region15: #{tpu_custom_call.1} parent=1 // pred_check_branch
      %30 = sbr.rel (0) target = $region17
    $region16: #{tpu_custom_call.1} parent=1 // pred_region
      %s32 = ssub.s32 32, 32
      %33 = vsyncadd [#allocation4], %s32
      %s35 = sshll.u32 [#allocation5], 4
      %s36 = int_to_ptr.vmem [resolvable:$true] %s35
      %38 = dma.vmem_to_hbm [thread:$0]  %s36, 32, %s2, [#allocation4]
    $region17: #{tpu_custom_call.1} parent=1 // pred_fallthru
      _
    // Predicated region
    $region18: #{tpu_custom_call.1} parent=1 // pred_check
      _
    $region19: #{tpu_custom_call.1} parent=1 // pred_check_branch
      %40 = sbr.rel (0) target = $region21
    $region20: #{tpu_custom_call.1} parent=1 // pred_region
      %41 = dma.done [#allocation4], 32
    $region21: #{tpu_custom_call.1} parent=1 // pred_fallthru
      _
    %42 = vsyncpa [#allocation3], 1
    %43 = vsyncpa [#allocation4], 1

</llo_original>
